<compile_context>
chip_gen: v5e
topology: v5e:2x2
jax: 0.10.0
libtpu: 0.0.40
codegen_flags: <defaults>
</compile_context>

<pallas_src>
import jax
import jax.numpy as jnp
from jax import lax
from jax.experimental import pallas as pl
from jax.experimental.pallas import tpu as pltpu


def _bilinear_kernel(x1_ref, x2_ref, w_ref, o_ref):
    """x1_ref: (tb, n1), x2_ref: (tb, n2), w_ref: (n1, n2), o_ref: (1, tb)."""
    n1 = w_ref.shape[0]
    f32 = jnp.float32
    # Contract the minor (lane) dims of both operands: A @ B^T on the MXU.
    dn_bt = (((1,), (1,)), ((), ()))

    # v[i, b] = sum_j W[i, j] * x2[b, j]        -> (n1, tb), batch on lanes
    v = lax.dot_general(
        w_ref[...], x2_ref[...], dn_bt,
        precision=lax.Precision.HIGHEST, preferred_element_type=f32)

    # x1^T via MXU identity-matmul (no XLU transpose, no wrapper HBM pass):
    # x1t[i, b] = sum_k eye[i, k] * x1[b, k] = x1[b, i]
    row = lax.broadcasted_iota(jnp.int32, (n1, n1), 0)
    col = lax.broadcasted_iota(jnp.int32, (n1, n1), 1)
    eye = jnp.where(row == col, f32(1), f32(0))
    x1t = lax.dot_general(
        eye, x1_ref[...], dn_bt,
        precision=lax.Precision.HIGHEST, preferred_element_type=f32)

    # y[0, b] = sum_i x1[b, i] * v[i, b]        -> VPU mul + sublane reduce
    y = jnp.sum(x1t * v, axis=0, keepdims=True)          # (1, tb)
    o_ref[...] = y.astype(o_ref.dtype)                   # lane-dense store


def bilinear_classifier(x1, x2, weight, bias, *, tb=4096,
                        small_batch_fastpath_threshold=256):
    """Pallas TPU forward of nn.Bilinear(num_inputs1, num_inputs2, 1).

    Args:
      x1:     (B, num_inputs1) float32
      x2:     (B, num_inputs2) float32
      weight: (1, num_inputs1, num_inputs2) float32   (PyTorch layout)
      bias:   (1,) float32
      tb:     batch tile (lanes per grid step), multiple of 128; sweep 2048-8192.
      small_batch_fastpath_threshold: below this batch size use plain XLA
        (kernel-launch + single-step overhead dwarfs the work). Set 0 to
        force the Pallas path.
    Returns:
      (B, 1) float32
    """
    B, n1 = x1.shape
    b2, n2 = x2.shape
    assert b2 == B
    w = weight.reshape(n1, n2)  # squeeze out_features == 1

    if B <= small_batch_fastpath_threshold:
        y = jnp.einsum("bi,ij,bj->b", x1, w, x2,
                       precision=lax.Precision.HIGHEST)
        return y[:, None] + bias[0]

    # Clamp the tile to the (128-rounded) batch; keep it a multiple of 128.
    tb_eff = min(int(tb), ((B + 127) // 128) * 128)
    nb = pl.cdiv(B, tb_eff)
    b_pad = nb * tb_eff  # output padded so every output store is full-lane

    flops = 2 * b_pad * n1 * (n1 + n2) + 2 * b_pad * n1
    bytes_accessed = 4 * (B * n1 + B * n2 + n1 * n2 + b_pad)

    out = pl.pallas_call(
        _bilinear_kernel,
        out_shape=jax.ShapeDtypeStruct((1, b_pad), jnp.float32),
        grid=(nb,),
        in_specs=[
            pl.BlockSpec((tb_eff, n1), lambda i: (i, 0)),   # x1 batch tile
            pl.BlockSpec((tb_eff, n2), lambda i: (i, 0)),   # x2 batch tile
            pl.BlockSpec((n1, n2), lambda i: (0, 0)),       # weight: resident
        ],
        out_specs=pl.BlockSpec((1, tb_eff), lambda i: (0, i)),  # lane-dense
        compiler_params=pltpu.CompilerParams(
            dimension_semantics=("parallel",)),             # v7x: 2 TCs
        cost_estimate=pl.CostEstimate(
            flops=flops, transcendentals=0, bytes_accessed=bytes_accessed),
    )(x1, x2, w)

    # Bias add fused into the surrounding XLA graph; slice off batch padding
    # (padded lanes hold garbage from partial input blocks and are dropped).
    return out[0, :B, None] + bias[0]


def bilinear_reference(x1, x2, weight, bias):
    # Pure-JAX reference matching torch.nn.functional.bilinear with out=1.
    y = jnp.einsum("bi,oij,bj->bo", x1, weight, x2,
                   precision=lax.Precision.HIGHEST)
    return y + bias[None, :]


def _make_case(key, B, n1, n2):
    k_x1, k_x2, k_w, k_b = jax.random.split(key, 4)
    x1 = jax.random.normal(k_x1, (B, n1), dtype=jnp.float32)
    x2 = jax.random.normal(k_x2, (B, n2), dtype=jnp.float32)
    # nn.Bilinear default init: U(-1/sqrt(in1), 1/sqrt(in1))
    bound = 1.0 / (n1 ** 0.5)
    weight = jax.random.uniform(k_w, (1, n1, n2), dtype=jnp.float32,
                                minval=-bound, maxval=bound)
    bias = jax.random.uniform(k_b, (1,), dtype=jnp.float32,
                              minval=-bound, maxval=bound)
    return x1, x2, weight, bias


if __name__ == "__main__":
    key = jax.random.PRNGKey(0)
    k1, k2, k3 = jax.random.split(key, 3)

    # Case 1: small, module-consistent shapes, forced through the Pallas
    # kernel (fast path disabled) -> exercises a single partial input block.
    x1, x2, w, b = _make_case(k1, 8, 32, 32)
    out = bilinear_classifier(x1, x2, w, b, small_batch_fastpath_threshold=0)
    out = jax.block_until_ready(out)
    ref = bilinear_reference(x1, x2, w, b)
    assert out.shape == (8, 1), out.shape
    assert jnp.allclose(out, ref, atol=1e-4, rtol=1e-4), (out, ref)

    # Case 2: multi-step grid with a partial last block and n1 != n2
    # (B=384, tb=256 -> 2 grid steps), still through the Pallas kernel.
    x1, x2, w, b = _make_case(k2, 384, 32, 48)
    out = bilinear_classifier(x1, x2, w, b, tb=256,
                              small_batch_fastpath_threshold=0)
    out = jax.block_until_ready(out)
    ref = bilinear_reference(x1, x2, w, b)
    assert out.shape == (384, 1), out.shape
    assert jnp.allclose(out, ref, atol=1e-4, rtol=1e-4), "case 2 mismatch"

    # Case 3: default small-batch XLA fast path (B=8 <= threshold).
    x1, x2, w, b = _make_case(k3, 8, 32, 32)
    out = bilinear_classifier(x1, x2, w, b)
    out = jax.block_until_ready(out)
    ref = bilinear_reference(x1, x2, w, b)
    assert out.shape == (8, 1), out.shape
    assert jnp.allclose(out, ref, atol=1e-4, rtol=1e-4), "case 3 mismatch"

    print("KERNEL_OK")
</pallas_src>

<mosaic_0001>
module attributes {stable_mosaic.version = 11 : i64} {
  func.func @_bilinear_kernel(%arg0: i32, %arg1: memref<128x32xf32, #tpu.memory_space<vmem>>, %arg2: memref<128x32xf32, #tpu.memory_space<vmem>>, %arg3: memref<32x32xf32, #tpu.memory_space<vmem>>, %arg4: memref<1x128xf32, #tpu.memory_space<vmem>>) attributes {dimension_semantics = [#tpu.dimension_semantics<parallel>], iteration_bounds = array<i64: 1>, scalar_prefetch = 0 : i64, scratch_operands = 0 : i64, tpu.core_type = #tpu.core_type<tc>, window_params = [{transform_indices = @transform_0, window_bounds = array<i64: 128, 32>}, {transform_indices = @transform_1, window_bounds = array<i64: 128, 32>}, {pipeline_mode = #tpu.pipeline_mode<synchronous>, transform_indices = @transform_2, window_bounds = array<i64: 32, 32>}, {transform_indices = @transform_3, window_bounds = array<i64: 1, 128>}]} {
    %c0 = arith.constant 0 : index
    %c0_0 = arith.constant 0 : index
    %0 = vector.load %arg3[%c0, %c0_0] : memref<32x32xf32, #tpu.memory_space<vmem>>, vector<32x32xf32>
    %c0_1 = arith.constant 0 : index
    %c0_2 = arith.constant 0 : index
    %1 = vector.load %arg2[%c0_1, %c0_2] : memref<128x32xf32, #tpu.memory_space<vmem>>, vector<128x32xf32>
    %cst = arith.constant dense<0.000000e+00> : vector<32x128xf32>
    %2 = tpu.matmul %0, %1, %cst {dimension_numbers = #tpu.dot_dimension_numbers<[1], [1], [0], [0], [0, 0, 1, 0], [], []>, precision = #tpu.contract_precision<fp32>} : vector<32x32xf32>, vector<128x32xf32>, vector<32x128xf32> -> vector<32x128xf32>
    %3 = tpu.iota {dimensions = array<i32: 0>} : vector<32x32xi32>
    %4 = tpu.iota {dimensions = array<i32: 1>} : vector<32x32xi32>
    %5 = arith.cmpi eq, %3, %4 : vector<32x32xi32>
    %cst_3 = arith.constant 1.000000e+00 : f32
    %cst_4 = arith.constant 0.000000e+00 : f32
    %6 = vector.broadcast %cst_3 : f32 to vector<32x32xf32>
    %7 = vector.broadcast %cst_4 : f32 to vector<32x32xf32>
    %8 = arith.select %5, %6, %7 : vector<32x32xi1>, vector<32x32xf32>
    %c0_5 = arith.constant 0 : index
    %c0_6 = arith.constant 0 : index
    %9 = vector.load %arg1[%c0_5, %c0_6] : memref<128x32xf32, #tpu.memory_space<vmem>>, vector<128x32xf32>
    %cst_7 = arith.constant dense<0.000000e+00> : vector<32x128xf32>
    %10 = tpu.matmul %8, %9, %cst_7 {dimension_numbers = #tpu.dot_dimension_numbers<[1], [1], [0], [0], [0, 0, 1, 0], [], []>, precision = #tpu.contract_precision<fp32>} : vector<32x32xf32>, vector<128x32xf32>, vector<32x128xf32> -> vector<32x128xf32>
    %11 = arith.mulf %10, %2 : vector<32x128xf32>
    %cst_8 = arith.constant dense<0.000000e+00> : vector<128xf32>
    %12 = vector.multi_reduction <add>, %11, %cst_8 [0] : vector<32x128xf32> to vector<128xf32>
    %13 = vector.shape_cast %12 : vector<128xf32> to vector<1x128xf32>
    %c0_9 = arith.constant 0 : index
    %c0_10 = arith.constant 0 : index
    %14 = vector.load %arg4[%c0_9, %c0_10] : memref<1x128xf32, #tpu.memory_space<vmem>>, vector<1x128xf32>
    tpu.vector_store %arg4[%c0_9, %c0_10], %13 {strides = array<i32>} : memref<1x128xf32, #tpu.memory_space<vmem>>, vector<1x128xf32>,
    return
  }
  func.func @transform_0(%arg0: i32) -> (i32, i32) {
    %c0_i32 = arith.constant 0 : i32
    %c0_i32_0 = arith.constant 0 : i32
    return %arg0, %c0_i32 : i32, i32
  }
  func.func @transform_1(%arg0: i32) -> (i32, i32) {
    %c0_i32 = arith.constant 0 : i32
    %c0_i32_0 = arith.constant 0 : i32
    return %arg0, %c0_i32 : i32, i32
  }
  func.func @transform_2(%arg0: i32) -> (i32, i32) {
    %c0_i32 = arith.constant 0 : i32
    %c0_i32_0 = arith.constant 0 : i32
    %c0_i32_1 = arith.constant 0 : i32
    return %c0_i32, %c0_i32_0 : i32, i32
  }
  func.func @transform_3(%arg0: i32) -> (i32, i32) {
    %c0_i32 = arith.constant 0 : i32
    %c0_i32_0 = arith.constant 0 : i32
    return %c0_i32, %arg0 : i32, i32
  }
}

</mosaic_0001>

<llo_original>
// kernel: tpu_custom_call.1
$region0: #{tpu_custom_call.1}
  #allocation0 [shape = 'u32[]', space=smem, size = 0x4, offset = 0x4, fixed_abs, tag = 'smem constant byte address 0x4 - core index']
  #allocation1 [shape = 'u32[72,128]{1,0:T(1,128)}', space=vmem, size = 0x9000, scoped, tag = 'internal scratch']
  %s0 = inlined_call_operand.hbm [shape: f32[8,32], index: 0, kind: input, shape index: {}]
  %s1 = inlined_call_operand.hbm [shape: f32[8,32], index: 1, kind: input, shape index: {}]
  %s2 = inlined_call_operand.hbm [shape: f32[32,32], index: 2, kind: input, shape index: {}]
  %s3 = inlined_call_operand.hbm [shape: f32[1,128], index: 3, kind: output, shape index: {}]
  %s4 = sld [smem:[#allocation0]]
  $region34: #{tpu_custom_call.1} parent=0
    _
  %s6 = ssub.s32 1, %s4
  %s7 = scalar_select 0, %s6, %s4
  $region1: #{tpu_custom_call.1} parent=0
    #allocation2 [shape = 'u8[65536]{0}', space=vmem, size = 0x10000, scoped, tag = 'input window, operand 0, single buffered']
    #allocation3 [shape = 's32[1]{0}', space=sflag, size = 0x4, scoped, tag = 'scoped memory for tpu_custom_call.1']
    #allocation4 [shape = 's32[1]{0}', space=sflag, size = 0x4, scoped, tag = 'scoped memory for tpu_custom_call.1']
    #allocation5 [shape = 'u8[65536]{0}', space=vmem, size = 0x10000, scoped, tag = 'input window, operand 1, single buffered']
    #allocation6 [shape = 's32[1]{0}', space=sflag, size = 0x4, scoped, tag = 'scoped memory for tpu_custom_call.1']
    #allocation7 [shape = 'u8[16384]{0}', space=vmem, size = 0x4000, scoped, tag = 'input window, operand 2, single buffered']
    #allocation8 [shape = 'u8[512]{0}', space=vmem, size = 0x400, scoped, tag = 'output window, operand 0, single buffered']
    %8 = vsyncpa [#allocation3], 0
    %9 = vsyncpa [#allocation6], 0
    %10 = vsyncpa [#allocation4], 0
    // Predicated region
    $region2: #{tpu_custom_call.1} parent=1 // pred_check
      _
    $region3: #{tpu_custom_call.1} parent=1 // pred_check_branch
      %12 = sbr.rel (0) target = $region5
    $region4: #{tpu_custom_call.1} parent=1 // pred_region
      %14 = vsyncadd [#allocation3], 1920
      %s15 = sshll.u32 %s0, 4
      %s16 = int_to_ptr.hbm [resolvable:$true] %s15
      %s17 = sshll.u32 [#allocation2], 4
      %s18 = int_to_ptr.vmem [resolvable:$true] %s17
      %23 = dma.hbm_to_vmem [thread:$0]  %s16, 128, %s18, [#allocation3], 128, 128, 8
    $region5: #{tpu_custom_call.1} parent=1 // pred_fallthru
      _
    // Predicated region
    $region6: #{tpu_custom_call.1} parent=1 // pred_check
      _
    $region7: #{tpu_custom_call.1} parent=1 // pred_check_branch
      %25 = sbr.rel (0) target = $region9
    $region8: #{tpu_custom_call.1} parent=1 // pred_region
      %27 = vsyncadd [#allocation6], 1920
      %s28 = sshll.u32 %s1, 4
      %s29 = int_to_ptr.hbm [resolvable:$true] %s28
      %s30 = sshll.u32 [#allocation5], 4
      %s31 = int_to_ptr.vmem [resolvable:$true] %s30
      %36 = dma.hbm_to_vmem [thread:$0]  %s29, 128, %s31, [#allocation6], 128, 128, 8
    $region9: #{tpu_custom_call.1} parent=1 // pred_fallthru
      _
    // Predicated region
    $region10: #{tpu_custom_call.1} parent=1 // pred_check
      _
    $region11: #{tpu_custom_call.1} parent=1 // pred_check_branch
      %38 = sbr.rel (0) target = $region13
    $region12: #{tpu_custom_call.1} parent=1 // pred_region
      %40 = vsyncadd [#allocation6], 0
      %s41 = sshll.u32 %s2, 4
      %s42 = int_to_ptr.hbm [resolvable:$true] %s41
      %s43 = sshll.u32 [#allocation7], 4
      %s44 = int_to_ptr.vmem [resolvable:$true] %s43
      %49 = dma.hbm_to_vmem [thread:$0]  %s42, 512, %s44, [#allocation6], 128, 128, 8
    $region13: #{tpu_custom_call.1} parent=1 // pred_fallthru
      _
    // Predicated region
    $region14: #{tpu_custom_call.1} parent=1 // pred_check
      _
    $region15: #{tpu_custom_call.1} parent=1 // pred_check_branch
      %51 = sbr.rel (0) target = $region17
    $region16: #{tpu_custom_call.1} parent=1 // pred_region
      %53 = dma.done [#allocation3], 2048
    $region17: #{tpu_custom_call.1} parent=1 // pred_fallthru
      _
    // Predicated region
    $region18: #{tpu_custom_call.1} parent=1 // pred_check
      _
    $region19: #{tpu_custom_call.1} parent=1 // pred_check_branch
      %55 = sbr.rel (0) target = $region21
    $region20: #{tpu_custom_call.1} parent=1 // pred_region
      %57 = dma.done [#allocation6], 2048
    $region21: #{tpu_custom_call.1} parent=1 // pred_fallthru
      _
    // Predicated region
    $region22: #{tpu_custom_call.1} parent=1 // pred_check
      _
    $region23: #{tpu_custom_call.1} parent=1 // pred_check_branch
      %59 = sbr.rel (0) target = $region25
    $region24: #{tpu_custom_call.1} parent=1 // pred_region
      %61 = dma.done [#allocation6], 512
    $region25: #{tpu_custom_call.1} parent=1 // pred_fallthru
      _
    %v62 = vld [vmem:[#allocation7] sm:$0xff]
    %v63 = vld [vmem:[#allocation7 + $0x8] sm:$0xff]
    %v64 = vld [vmem:[#allocation7 + $0x10] sm:$0xff]
    %v65 = vld [vmem:[#allocation7 + $0x18] sm:$0xff]
    %v66 = vld [vmem:[#allocation5] sm:$0xff]
    %v67 = vld [vmem:[#allocation5 + $0x8] sm:$0xff]
    %v68 = vld [vmem:[#allocation5 + $0x10] sm:$0xff]
    %v69 = vld [vmem:[#allocation5 + $0x18] sm:$0xff]
    %v70 = vld [vmem:[#allocation5 + $0x20] sm:$0xff]
    %v71 = vld [vmem:[#allocation5 + $0x28] sm:$0xff]
    %v72 = vld [vmem:[#allocation5 + $0x30] sm:$0xff]
    %v73 = vld [vmem:[#allocation5 + $0x38] sm:$0xff]
    %v74 = vld [vmem:[#allocation5 + $0x40] sm:$0xff]
    %v75 = vld [vmem:[#allocation5 + $0x48] sm:$0xff]
    %v76 = vld [vmem:[#allocation5 + $0x50] sm:$0xff]
    %v77 = vld [vmem:[#allocation5 + $0x58] sm:$0xff]
    %v78 = vld [vmem:[#allocation5 + $0x60] sm:$0xff]
    %v79 = vld [vmem:[#allocation5 + $0x68] sm:$0xff]
    %v80 = vld [vmem:[#allocation5 + $0x70] sm:$0xff]
    %v81 = vld [vmem:[#allocation5 + $0x78] sm:$0xff]
    %vm82 = vcmask 261120
    %v84 = vsel %vm82, %v62, 0
    %v87 = vsel %vm82, %v63, 0
    %v90 = vsel %vm82, %v64, 0
    %v93 = vsel %vm82, %v65, 0
    %v96 = vsel %vm82, %v66, 0
    %v99 = vsel %vm82, %v67, 0
    %v102 = vsel %vm82, %v68, 0
    %v105 = vsel %vm82, %v69, 0
    %v108 = vsel %vm82, %v70, 0
    %v111 = vsel %vm82, %v71, 0
    %v114 = vsel %vm82, %v72, 0
    %v117 = vsel %vm82, %v73, 0
    %v120 = vsel %vm82, %v74, 0
    %v123 = vsel %vm82, %v75, 0
    %v126 = vsel %vm82, %v76, 0
    %v129 = vsel %vm82, %v77, 0
    %v132 = vsel %vm82, %v78, 0
    %v135 = vsel %vm82, %v79, 0
    %v138 = vsel %vm82, %v80, 0
    %v141 = vsel %vm82, %v81, 0
    %v143 = vand.u32 %v141, 4294901760
    %144 = vmatpush.xpose.msra.mxu0 %v143
    %v145 = vand.u32 %v138, 4294901760
    %146 = vmatpush.xpose.msra.mxu0 %v145
    %v147 = vand.u32 %v135, 4294901760
    %148 = vmatpush.xpose.msra.mxu0 %v147
    %v149 = vand.u32 %v132, 4294901760
    %150 = vmatpush.xpose.msra.mxu0 %v149
    %v151 = vand.u32 %v129, 4294901760
    %152 = vmatpush.xpose.msra.mxu0 %v151
    %v153 = vand.u32 %v126, 4294901760
    %154 = vmatpush.xpose.msra.mxu0 %v153
    %v155 = vand.u32 %v123, 4294901760
    %156 = vmatpush.xpose.msra.mxu0 %v155
    %v157 = vand.u32 %v120, 4294901760
    %158 = vmatpush.xpose.msra.mxu0 %v157
    %v159 = vand.u32 %v117, 4294901760
    %160 = vmatpush.xpose.msra.mxu0 %v159
    %v161 = vand.u32 %v114, 4294901760
    %162 = vmatpush.xpose.msra.mxu0 %v161
    %v163 = vand.u32 %v111, 4294901760
    %164 = vmatpush.xpose.msra.mxu0 %v163
    %v165 = vand.u32 %v108, 4294901760
    %166 = vmatpush.xpose.msra.mxu0 %v165
    %v167 = vand.u32 %v105, 4294901760
    %168 = vmatpush.xpose.msra.mxu0 %v167
    %v169 = vand.u32 %v102, 4294901760
    %170 = vmatpush.xpose.msra.mxu0 %v169
    %v171 = vand.u32 %v99, 4294901760
    %172 = vmatpush.xpose.msra.mxu0 %v171
    %v173 = vand.u32 %v96, 4294901760
    %174 = vmatpush.xpose.msra.mxu0 %v173
    %v175 = vand.u32 %v84, 4294901760
    %v176 = vsub.f32 %v84, %v175
    %v177 = vand.u32 %v176, 4294901760
    %v178 = vsub.f32 %v176, %v177
    %v179 = vand.u32 %v178, 4294901760
    %180 = vmatmul.f32.gmra.mxu0 %v179
    %v181 = vpop.f32.mrf.mxu0
    %v182 = vadd.f32 0.0, %v181
    %v183 = vand.u32 %v87, 4294901760
    %v184 = vsub.f32 %v87, %v183
    %v185 = vand.u32 %v184, 4294901760
    %v186 = vsub.f32 %v184, %v185
    %v187 = vand.u32 %v186, 4294901760
    %188 = vmatmul.f32.gmra.mxu0 %v187
    %v189 = vpop.f32.mrf.mxu0
    %v190 = vadd.f32 0.0, %v189
    %v191 = vand.u32 %v90, 4294901760
    %v192 = vsub.f32 %v90, %v191
    %v193 = vand.u32 %v192, 4294901760
    %v194 = vsub.f32 %v192, %v193
    %v195 = vand.u32 %v194, 4294901760
    %196 = vmatmul.f32.gmra.mxu0 %v195
    %v197 = vpop.f32.mrf.mxu0
    %v198 = vadd.f32 0.0, %v197
    %v199 = vand.u32 %v93, 4294901760
    %v200 = vsub.f32 %v93, %v199
    %v201 = vand.u32 %v200, 4294901760
    %v202 = vsub.f32 %v200, %v201
    %v203 = vand.u32 %v202, 4294901760
    %204 = vmatmul.f32.gmra.mxu0 %v203
    %v205 = vpop.f32.mrf.mxu0
    %v206 = vadd.f32 0.0, %v205
    %207 = vdwg.mxu0
    %v208 = vand.u32 %v141, 4294901760
    %v209 = vsub.f32 %v141, %v208
    %v210 = vand.u32 %v209, 4294901760
    %v211 = vsub.f32 %v209, %v210
    %v212 = vand.u32 %v211, 4294901760
    %213 = vmatpush.xpose.msra.mxu0 %v212
    %v214 = vand.u32 %v138, 4294901760
    %v215 = vsub.f32 %v138, %v214
    %v216 = vand.u32 %v215, 4294901760
    %v217 = vsub.f32 %v215, %v216
    %v218 = vand.u32 %v217, 4294901760
    %219 = vmatpush.xpose.msra.mxu0 %v218
    %v220 = vand.u32 %v135, 4294901760
    %v221 = vsub.f32 %v135, %v220
    %v222 = vand.u32 %v221, 4294901760
    %v223 = vsub.f32 %v221, %v222
    %v224 = vand.u32 %v223, 4294901760
    %225 = vmatpush.xpose.msra.mxu0 %v224
    %v226 = vand.u32 %v132, 4294901760
    %v227 = vsub.f32 %v132, %v226
    %v228 = vand.u32 %v227, 4294901760
    %v229 = vsub.f32 %v227, %v228
    %v230 = vand.u32 %v229, 4294901760
    %231 = vmatpush.xpose.msra.mxu0 %v230
    %v232 = vand.u32 %v129, 4294901760
    %v233 = vsub.f32 %v129, %v232
    %v234 = vand.u32 %v233, 4294901760
    %v235 = vsub.f32 %v233, %v234
    %v236 = vand.u32 %v235, 4294901760
    %237 = vmatpush.xpose.msra.mxu0 %v236
    %v238 = vand.u32 %v126, 4294901760
    %v239 = vsub.f32 %v126, %v238
    %v240 = vand.u32 %v239, 4294901760
    %v241 = vsub.f32 %v239, %v240
    %v242 = vand.u32 %v241, 4294901760
    %243 = vmatpush.xpose.msra.mxu0 %v242
    %v244 = vand.u32 %v123, 4294901760
    %v245 = vsub.f32 %v123, %v244
    %v246 = vand.u32 %v245, 4294901760
    %v247 = vsub.f32 %v245, %v246
    %v248 = vand.u32 %v247, 4294901760
    %249 = vmatpush.xpose.msra.mxu0 %v248
    %v250 = vand.u32 %v120, 4294901760
    %v251 = vsub.f32 %v120, %v250
    %v252 = vand.u32 %v251, 4294901760
    %v253 = vsub.f32 %v251, %v252
    %v254 = vand.u32 %v253, 4294901760
    %255 = vmatpush.xpose.msra.mxu0 %v254
    %v256 = vand.u32 %v117, 4294901760
    %v257 = vsub.f32 %v117, %v256
    %v258 = vand.u32 %v257, 4294901760
    %v259 = vsub.f32 %v257, %v258
    %v260 = vand.u32 %v259, 4294901760
    %261 = vmatpush.xpose.msra.mxu0 %v260
    %v262 = vand.u32 %v114, 4294901760
    %v263 = vsub.f32 %v114, %v262
    %v264 = vand.u32 %v263, 4294901760
    %v265 = vsub.f32 %v263, %v264
    %v266 = vand.u32 %v265, 4294901760
    %267 = vmatpush.xpose.msra.mxu0 %v266
    %v268 = vand.u32 %v111, 4294901760
    %v269 = vsub.f32 %v111, %v268
    %v270 = vand.u32 %v269, 4294901760
    %v271 = vsub.f32 %v269, %v270
    %v272 = vand.u32 %v271, 4294901760
    %273 = vmatpush.xpose.msra.mxu0 %v272
    %v274 = vand.u32 %v108, 4294901760
    %v275 = vsub.f32 %v108, %v274
    %v276 = vand.u32 %v275, 4294901760
    %v277 = vsub.f32 %v275, %v276
    %v278 = vand.u32 %v277, 4294901760
    %279 = vmatpush.xpose.msra.mxu0 %v278
    %v280 = vand.u32 %v105, 4294901760
    %v281 = vsub.f32 %v105, %v280
    %v282 = vand.u32 %v281, 4294901760
    %v283 = vsub.f32 %v281, %v282
    %v284 = vand.u32 %v283, 4294901760
    %285 = vmatpush.xpose.msra.mxu0 %v284
    %v286 = vand.u32 %v102, 4294901760
    %v287 = vsub.f32 %v102, %v286
    %v288 = vand.u32 %v287, 4294901760
    %v289 = vsub.f32 %v287, %v288
    %v290 = vand.u32 %v289, 4294901760
    %291 = vmatpush.xpose.msra.mxu0 %v290
    %v292 = vand.u32 %v99, 4294901760
    %v293 = vsub.f32 %v99, %v292
    %v294 = vand.u32 %v293, 4294901760
    %v295 = vsub.f32 %v293, %v294
    %v296 = vand.u32 %v295, 4294901760
    %297 = vmatpush.xpose.msra.mxu0 %v296
    %v298 = vand.u32 %v96, 4294901760
    %v299 = vsub.f32 %v96, %v298
    %v300 = vand.u32 %v299, 4294901760
    %v301 = vsub.f32 %v299, %v300
    %v302 = vand.u32 %v301, 4294901760
    %303 = vmatpush.xpose.msra.mxu0 %v302
    %v304 = vand.u32 %v84, 4294901760
    %305 = vmatmul.f32.gmra.mxu0 %v304
    %v306 = vpop.f32.mrf.mxu0
    %v307 = vadd.f32 %v182, %v306
    %v308 = vand.u32 %v87, 4294901760
    %309 = vmatmul.f32.gmra.mxu0 %v308
    %v310 = vpop.f32.mrf.mxu0
    %v311 = vadd.f32 %v190, %v310
    %v312 = vand.u32 %v90, 4294901760
    %313 = vmatmul.f32.gmra.mxu0 %v312
    %v314 = vpop.f32.mrf.mxu0
    %v315 = vadd.f32 %v198, %v314
    %v316 = vand.u32 %v93, 4294901760
    %317 = vmatmul.f32.gmra.mxu0 %v316
    %v318 = vpop.f32.mrf.mxu0
    %v319 = vadd.f32 %v206, %v318
    %320 = vdwg.mxu0
    %v321 = vand.u32 %v141, 4294901760
    %v322 = vsub.f32 %v141, %v321
    %323 = vmatpush.xpose.msra.mxu0 %v322
    %v324 = vand.u32 %v138, 4294901760
    %v325 = vsub.f32 %v138, %v324
    %326 = vmatpush.xpose.msra.mxu0 %v325
    %v327 = vand.u32 %v135, 4294901760
    %v328 = vsub.f32 %v135, %v327
    %329 = vmatpush.xpose.msra.mxu0 %v328
    %v330 = vand.u32 %v132, 4294901760
    %v331 = vsub.f32 %v132, %v330
    %332 = vmatpush.xpose.msra.mxu0 %v331
    %v333 = vand.u32 %v129, 4294901760
    %v334 = vsub.f32 %v129, %v333
    %335 = vmatpush.xpose.msra.mxu0 %v334
    %v336 = vand.u32 %v126, 4294901760
    %v337 = vsub.f32 %v126, %v336
    %338 = vmatpush.xpose.msra.mxu0 %v337
    %v339 = vand.u32 %v123, 4294901760
    %v340 = vsub.f32 %v123, %v339
    %341 = vmatpush.xpose.msra.mxu0 %v340
    %v342 = vand.u32 %v120, 4294901760
    %v343 = vsub.f32 %v120, %v342
    %344 = vmatpush.xpose.msra.mxu0 %v343
    %v345 = vand.u32 %v117, 4294901760
    %v346 = vsub.f32 %v117, %v345
    %347 = vmatpush.xpose.msra.mxu0 %v346
    %v348 = vand.u32 %v114, 4294901760
    %v349 = vsub.f32 %v114, %v348
    %350 = vmatpush.xpose.msra.mxu0 %v349
    %v351 = vand.u32 %v111, 4294901760
    %v352 = vsub.f32 %v111, %v351
    %353 = vmatpush.xpose.msra.mxu0 %v352
    %v354 = vand.u32 %v108, 4294901760
    %v355 = vsub.f32 %v108, %v354
    %356 = vmatpush.xpose.msra.mxu0 %v355
    %v357 = vand.u32 %v105, 4294901760
    %v358 = vsub.f32 %v105, %v357
    %359 = vmatpush.xpose.msra.mxu0 %v358
    %v360 = vand.u32 %v102, 4294901760
    %v361 = vsub.f32 %v102, %v360
    %362 = vmatpush.xpose.msra.mxu0 %v361
    %v363 = vand.u32 %v99, 4294901760
    %v364 = vsub.f32 %v99, %v363
    %365 = vmatpush.xpose.msra.mxu0 %v364
    %v366 = vand.u32 %v96, 4294901760
    %v367 = vsub.f32 %v96, %v366
    %368 = vmatpush.xpose.msra.mxu0 %v367
    %v369 = vand.u32 %v84, 4294901760
    %v370 = vsub.f32 %v84, %v369
    %371 = vmatmul.f32.gmra.mxu0 %v370
    %v372 = vpop.f32.mrf.mxu0
    %v373 = vadd.f32 %v307, %v372
    %v374 = vand.u32 %v87, 4294901760
    %v375 = vsub.f32 %v87, %v374
    %376 = vmatmul.f32.gmra.mxu0 %v375
    %v377 = vpop.f32.mrf.mxu0
    %v378 = vadd.f32 %v311, %v377
    %v379 = vand.u32 %v90, 4294901760
    %v380 = vsub.f32 %v90, %v379
    %381 = vmatmul.f32.gmra.mxu0 %v380
    %v382 = vpop.f32.mrf.mxu0
    %v383 = vadd.f32 %v315, %v382
    %v384 = vand.u32 %v93, 4294901760
    %v385 = vsub.f32 %v93, %v384
    %386 = vmatmul.f32.gmra.mxu0 %v385
    %v387 = vpop.f32.mrf.mxu0
    %v388 = vadd.f32 %v319, %v387
    %389 = vdwg.mxu0
    %v390 = vand.u32 %v141, 4294901760
    %391 = vmatpush.xpose.msra.mxu0 %v390
    %v392 = vand.u32 %v138, 4294901760
    %393 = vmatpush.xpose.msra.mxu0 %v392
    %v394 = vand.u32 %v135, 4294901760
    %395 = vmatpush.xpose.msra.mxu0 %v394
    %v396 = vand.u32 %v132, 4294901760
    %397 = vmatpush.xpose.msra.mxu0 %v396
    %v398 = vand.u32 %v129, 4294901760
    %399 = vmatpush.xpose.msra.mxu0 %v398
    %v400 = vand.u32 %v126, 4294901760
    %401 = vmatpush.xpose.msra.mxu0 %v400
    %v402 = vand.u32 %v123, 4294901760
    %403 = vmatpush.xpose.msra.mxu0 %v402
    %v404 = vand.u32 %v120, 4294901760
    %405 = vmatpush.xpose.msra.mxu0 %v404
    %v406 = vand.u32 %v117, 4294901760
    %407 = vmatpush.xpose.msra.mxu0 %v406
    %v408 = vand.u32 %v114, 4294901760
    %409 = vmatpush.xpose.msra.mxu0 %v408
    %v410 = vand.u32 %v111, 4294901760
    %411 = vmatpush.xpose.msra.mxu0 %v410
    %v412 = vand.u32 %v108, 4294901760
    %413 = vmatpush.xpose.msra.mxu0 %v412
    %v414 = vand.u32 %v105, 4294901760
    %415 = vmatpush.xpose.msra.mxu0 %v414
    %v416 = vand.u32 %v102, 4294901760
    %417 = vmatpush.xpose.msra.mxu0 %v416
    %v418 = vand.u32 %v99, 4294901760
    %419 = vmatpush.xpose.msra.mxu0 %v418
    %v420 = vand.u32 %v96, 4294901760
    %421 = vmatpush.xpose.msra.mxu0 %v420
    %v422 = vand.u32 %v84, 4294901760
    %v423 = vsub.f32 %v84, %v422
    %v424 = vand.u32 %v423, 4294901760
    %425 = vmatmul.f32.gmra.mxu0 %v424
    %v426 = vpop.f32.mrf.mxu0
    %v427 = vadd.f32 %v373, %v426
    %v428 = vand.u32 %v87, 4294901760
    %v429 = vsub.f32 %v87, %v428
    %v430 = vand.u32 %v429, 4294901760
    %431 = vmatmul.f32.gmra.mxu0 %v430
    %v432 = vpop.f32.mrf.mxu0
    %v433 = vadd.f32 %v378, %v432
    %v434 = vand.u32 %v90, 4294901760
    %v435 = vsub.f32 %v90, %v434
    %v436 = vand.u32 %v435, 4294901760
    %437 = vmatmul.f32.gmra.mxu0 %v436
    %v438 = vpop.f32.mrf.mxu0
    %v439 = vadd.f32 %v383, %v438
    %v440 = vand.u32 %v93, 4294901760
    %v441 = vsub.f32 %v93, %v440
    %v442 = vand.u32 %v441, 4294901760
    %443 = vmatmul.f32.gmra.mxu0 %v442
    %v444 = vpop.f32.mrf.mxu0
    %v445 = vadd.f32 %v388, %v444
    %446 = vdwg.mxu0
    %v447 = vand.u32 %v141, 4294901760
    %v448 = vsub.f32 %v141, %v447
    %v449 = vand.u32 %v448, 4294901760
    %450 = vmatpush.xpose.msra.mxu0 %v449
    %v451 = vand.u32 %v138, 4294901760
    %v452 = vsub.f32 %v138, %v451
    %v453 = vand.u32 %v452, 4294901760
    %454 = vmatpush.xpose.msra.mxu0 %v453
    %v455 = vand.u32 %v135, 4294901760
    %v456 = vsub.f32 %v135, %v455
    %v457 = vand.u32 %v456, 4294901760
    %458 = vmatpush.xpose.msra.mxu0 %v457
    %v459 = vand.u32 %v132, 4294901760
    %v460 = vsub.f32 %v132, %v459
    %v461 = vand.u32 %v460, 4294901760
    %462 = vmatpush.xpose.msra.mxu0 %v461
    %v463 = vand.u32 %v129, 4294901760
    %v464 = vsub.f32 %v129, %v463
    %v465 = vand.u32 %v464, 4294901760
    %466 = vmatpush.xpose.msra.mxu0 %v465
    %v467 = vand.u32 %v126, 4294901760
    %v468 = vsub.f32 %v126, %v467
    %v469 = vand.u32 %v468, 4294901760
    %470 = vmatpush.xpose.msra.mxu0 %v469
    %v471 = vand.u32 %v123, 4294901760
    %v472 = vsub.f32 %v123, %v471
    %v473 = vand.u32 %v472, 4294901760
    %474 = vmatpush.xpose.msra.mxu0 %v473
    %v475 = vand.u32 %v120, 4294901760
    %v476 = vsub.f32 %v120, %v475
    %v477 = vand.u32 %v476, 4294901760
    %478 = vmatpush.xpose.msra.mxu0 %v477
    %v479 = vand.u32 %v117, 4294901760
    %v480 = vsub.f32 %v117, %v479
    %v481 = vand.u32 %v480, 4294901760
    %482 = vmatpush.xpose.msra.mxu0 %v481
    %v483 = vand.u32 %v114, 4294901760
    %v484 = vsub.f32 %v114, %v483
    %v485 = vand.u32 %v484, 4294901760
    %486 = vmatpush.xpose.msra.mxu0 %v485
    %v487 = vand.u32 %v111, 4294901760
    %v488 = vsub.f32 %v111, %v487
    %v489 = vand.u32 %v488, 4294901760
    %490 = vmatpush.xpose.msra.mxu0 %v489
    %v491 = vand.u32 %v108, 4294901760
    %v492 = vsub.f32 %v108, %v491
    %v493 = vand.u32 %v492, 4294901760
    %494 = vmatpush.xpose.msra.mxu0 %v493
    %v495 = vand.u32 %v105, 4294901760
    %v496 = vsub.f32 %v105, %v495
    %v497 = vand.u32 %v496, 4294901760
    %498 = vmatpush.xpose.msra.mxu0 %v497
    %v499 = vand.u32 %v102, 4294901760
    %v500 = vsub.f32 %v102, %v499
    %v501 = vand.u32 %v500, 4294901760
    %502 = vmatpush.xpose.msra.mxu0 %v501
    %v503 = vand.u32 %v99, 4294901760
    %v504 = vsub.f32 %v99, %v503
    %v505 = vand.u32 %v504, 4294901760
    %506 = vmatpush.xpose.msra.mxu0 %v505
    %v507 = vand.u32 %v96, 4294901760
    %v508 = vsub.f32 %v96, %v507
    %v509 = vand.u32 %v508, 4294901760
    %510 = vmatpush.xpose.msra.mxu0 %v509
    %v511 = vand.u32 %v84, 4294901760
    %512 = vmatmul.f32.gmra.mxu0 %v511
    %v513 = vpop.f32.mrf.mxu0
    %v514 = vadd.f32 %v427, %v513
    %v515 = vand.u32 %v87, 4294901760
    %516 = vmatmul.f32.gmra.mxu0 %v515
    %v517 = vpop.f32.mrf.mxu0
    %v518 = vadd.f32 %v433, %v517
    %v519 = vand.u32 %v90, 4294901760
    %520 = vmatmul.f32.gmra.mxu0 %v519
    %v521 = vpop.f32.mrf.mxu0
    %v522 = vadd.f32 %v439, %v521
    %v523 = vand.u32 %v93, 4294901760
    %524 = vmatmul.f32.gmra.mxu0 %v523
    %v525 = vpop.f32.mrf.mxu0
    %v526 = vadd.f32 %v445, %v525
    %527 = vdwg.mxu0
    %v528 = vand.u32 %v141, 4294901760
    %529 = vmatpush.xpose.msra.mxu0 %v528
    %v530 = vand.u32 %v138, 4294901760
    %531 = vmatpush.xpose.msra.mxu0 %v530
    %v532 = vand.u32 %v135, 4294901760
    %533 = vmatpush.xpose.msra.mxu0 %v532
    %v534 = vand.u32 %v132, 4294901760
    %535 = vmatpush.xpose.msra.mxu0 %v534
    %v536 = vand.u32 %v129, 4294901760
    %537 = vmatpush.xpose.msra.mxu0 %v536
    %v538 = vand.u32 %v126, 4294901760
    %539 = vmatpush.xpose.msra.mxu0 %v538
    %v540 = vand.u32 %v123, 4294901760
    %541 = vmatpush.xpose.msra.mxu0 %v540
    %v542 = vand.u32 %v120, 4294901760
    %543 = vmatpush.xpose.msra.mxu0 %v542
    %v544 = vand.u32 %v117, 4294901760
    %545 = vmatpush.xpose.msra.mxu0 %v544
    %v546 = vand.u32 %v114, 4294901760
    %547 = vmatpush.xpose.msra.mxu0 %v546
    %v548 = vand.u32 %v111, 4294901760
    %549 = vmatpush.xpose.msra.mxu0 %v548
    %v550 = vand.u32 %v108, 4294901760
    %551 = vmatpush.xpose.msra.mxu0 %v550
    %v552 = vand.u32 %v105, 4294901760
    %553 = vmatpush.xpose.msra.mxu0 %v552
    %v554 = vand.u32 %v102, 4294901760
    %555 = vmatpush.xpose.msra.mxu0 %v554
    %v556 = vand.u32 %v99, 4294901760
    %557 = vmatpush.xpose.msra.mxu0 %v556
    %v558 = vand.u32 %v96, 4294901760
    %559 = vmatpush.xpose.msra.mxu0 %v558
    %v560 = vand.u32 %v84, 4294901760
    %561 = vmatmul.f32.gmra.mxu0 %v560
    %v562 = vpop.f32.mrf.mxu0
    %v563 = vadd.f32 %v514, %v562
    %v564 = vand.u32 %v87, 4294901760
    %565 = vmatmul.f32.gmra.mxu0 %v564
    %v566 = vpop.f32.mrf.mxu0
    %v567 = vadd.f32 %v518, %v566
    %v568 = vand.u32 %v90, 4294901760
    %569 = vmatmul.f32.gmra.mxu0 %v568
    %v570 = vpop.f32.mrf.mxu0
    %v571 = vadd.f32 %v522, %v570
    %v572 = vand.u32 %v93, 4294901760
    %573 = vmatmul.f32.gmra.mxu0 %v572
    %v574 = vpop.f32.mrf.mxu0
    %v575 = vadd.f32 %v526, %v574
    %576 = vdwg.mxu0
    %v577 = vlaneseq
    %v578 = vshrl.u32 %v577, 7
    %v579 = vadd.s32 %v578, 8
    %v580 = vadd.s32 %v578, 16
    %v581 = vadd.s32 %v578, 24
    %v582 = vlaneseq
    %v583 = vand.u32 %v582, 127
    %vm584 = vcmp.eq.s32.totalorder %v578, %v583
    %vm585 = vcmp.eq.s32.totalorder %v579, %v583
    %vm586 = vcmp.eq.s32.totalorder %v580, %v583
    %vm587 = vcmp.eq.s32.totalorder %v581, %v583
    %v588 = vsel %vm584, 1.0, 0.0
    %v589 = vsel %vm585, 1.0, 0.0
    %v590 = vsel %vm586, 1.0, 0.0
    %v591 = vsel %vm587, 1.0, 0.0
    %v592 = vld [vmem:[#allocation2] sm:$0xff]
    %v593 = vld [vmem:[#allocation2 + $0x8] sm:$0xff]
    %v594 = vld [vmem:[#allocation2 + $0x10] sm:$0xff]
    %v595 = vld [vmem:[#allocation2 + $0x18] sm:$0xff]
    %v596 = vld [vmem:[#allocation2 + $0x20] sm:$0xff]
    %v597 = vld [vmem:[#allocation2 + $0x28] sm:$0xff]
    %v598 = vld [vmem:[#allocation2 + $0x30] sm:$0xff]
    %v599 = vld [vmem:[#allocation2 + $0x38] sm:$0xff]
    %v600 = vld [vmem:[#allocation2 + $0x40] sm:$0xff]
    %v601 = vld [vmem:[#allocation2 + $0x48] sm:$0xff]
    %v602 = vld [vmem:[#allocation2 + $0x50] sm:$0xff]
    %v603 = vld [vmem:[#allocation2 + $0x58] sm:$0xff]
    %v604 = vld [vmem:[#allocation2 + $0x60] sm:$0xff]
    %v605 = vld [vmem:[#allocation2 + $0x68] sm:$0xff]
    %v606 = vld [vmem:[#allocation2 + $0x70] sm:$0xff]
    %v607 = vld [vmem:[#allocation2 + $0x78] sm:$0xff]
    %v609 = vsel %vm82, %v588, 0
    %v612 = vsel %vm82, %v589, 0
    %v615 = vsel %vm82, %v590, 0
    %v618 = vsel %vm82, %v591, 0
    %v621 = vsel %vm82, %v592, 0
    %v624 = vsel %vm82, %v593, 0
    %v627 = vsel %vm82, %v594, 0
    %v630 = vsel %vm82, %v595, 0
    %v633 = vsel %vm82, %v596, 0
    %v636 = vsel %vm82, %v597, 0
    %v639 = vsel %vm82, %v598, 0
    %v642 = vsel %vm82, %v599, 0
    %v645 = vsel %vm82, %v600, 0
    %v648 = vsel %vm82, %v601, 0
    %v651 = vsel %vm82, %v602, 0
    %v654 = vsel %vm82, %v603, 0
    %v657 = vsel %vm82, %v604, 0
    %v660 = vsel %vm82, %v605, 0
    %v663 = vsel %vm82, %v606, 0
    %v666 = vsel %vm82, %v607, 0
    %v668 = vand.u32 %v666, 4294901760
    %669 = vmatpush.xpose.msra.mxu0 %v668
    %v670 = vand.u32 %v663, 4294901760
    %671 = vmatpush.xpose.msra.mxu0 %v670
    %v672 = vand.u32 %v660, 4294901760
    %673 = vmatpush.xpose.msra.mxu0 %v672
    %v674 = vand.u32 %v657, 4294901760
    %675 = vmatpush.xpose.msra.mxu0 %v674
    %v676 = vand.u32 %v654, 4294901760
    %677 = vmatpush.xpose.msra.mxu0 %v676
    %v678 = vand.u32 %v651, 4294901760
    %679 = vmatpush.xpose.msra.mxu0 %v678
    %v680 = vand.u32 %v648, 4294901760
    %681 = vmatpush.xpose.msra.mxu0 %v680
    %v682 = vand.u32 %v645, 4294901760
    %683 = vmatpush.xpose.msra.mxu0 %v682
    %v684 = vand.u32 %v642, 4294901760
    %685 = vmatpush.xpose.msra.mxu0 %v684
    %v686 = vand.u32 %v639, 4294901760
    %687 = vmatpush.xpose.msra.mxu0 %v686
    %v688 = vand.u32 %v636, 4294901760
    %689 = vmatpush.xpose.msra.mxu0 %v688
    %v690 = vand.u32 %v633, 4294901760
    %691 = vmatpush.xpose.msra.mxu0 %v690
    %v692 = vand.u32 %v630, 4294901760
    %693 = vmatpush.xpose.msra.mxu0 %v692
    %v694 = vand.u32 %v627, 4294901760
    %695 = vmatpush.xpose.msra.mxu0 %v694
    %v696 = vand.u32 %v624, 4294901760
    %697 = vmatpush.xpose.msra.mxu0 %v696
    %v698 = vand.u32 %v621, 4294901760
    %699 = vmatpush.xpose.msra.mxu0 %v698
    %v700 = vand.u32 %v609, 4294901760
    %v701 = vsub.f32 %v609, %v700
    %v702 = vand.u32 %v701, 4294901760
    %v703 = vsub.f32 %v701, %v702
    %v704 = vand.u32 %v703, 4294901760
    %705 = vmatmul.f32.gmra.mxu0 %v704
    %v706 = vpop.f32.mrf.mxu0
    %v707 = vadd.f32 0.0, %v706
    %v708 = vand.u32 %v612, 4294901760
    %v709 = vsub.f32 %v612, %v708
    %v710 = vand.u32 %v709, 4294901760
    %v711 = vsub.f32 %v709, %v710
    %v712 = vand.u32 %v711, 4294901760
    %713 = vmatmul.f32.gmra.mxu0 %v712
    %v714 = vpop.f32.mrf.mxu0
    %v715 = vadd.f32 0.0, %v714
    %v716 = vand.u32 %v615, 4294901760
    %v717 = vsub.f32 %v615, %v716
    %v718 = vand.u32 %v717, 4294901760
    %v719 = vsub.f32 %v717, %v718
    %v720 = vand.u32 %v719, 4294901760
    %721 = vmatmul.f32.gmra.mxu0 %v720
    %v722 = vpop.f32.mrf.mxu0
    %v723 = vadd.f32 0.0, %v722
    %v724 = vand.u32 %v618, 4294901760
    %v725 = vsub.f32 %v618, %v724
    %v726 = vand.u32 %v725, 4294901760
    %v727 = vsub.f32 %v725, %v726
    %v728 = vand.u32 %v727, 4294901760
    %729 = vmatmul.f32.gmra.mxu0 %v728
    %v730 = vpop.f32.mrf.mxu0
    %v731 = vadd.f32 0.0, %v730
    %732 = vdwg.mxu0
    %v733 = vand.u32 %v666, 4294901760
    %v734 = vsub.f32 %v666, %v733
    %v735 = vand.u32 %v734, 4294901760
    %v736 = vsub.f32 %v734, %v735
    %v737 = vand.u32 %v736, 4294901760
    %738 = vmatpush.xpose.msra.mxu0 %v737
    %v739 = vand.u32 %v663, 4294901760
    %v740 = vsub.f32 %v663, %v739
    %v741 = vand.u32 %v740, 4294901760
    %v742 = vsub.f32 %v740, %v741
    %v743 = vand.u32 %v742, 4294901760
    %744 = vmatpush.xpose.msra.mxu0 %v743
    %v745 = vand.u32 %v660, 4294901760
    %v746 = vsub.f32 %v660, %v745
    %v747 = vand.u32 %v746, 4294901760
    %v748 = vsub.f32 %v746, %v747
    %v749 = vand.u32 %v748, 4294901760
    %750 = vmatpush.xpose.msra.mxu0 %v749
    %v751 = vand.u32 %v657, 4294901760
    %v752 = vsub.f32 %v657, %v751
    %v753 = vand.u32 %v752, 4294901760
    %v754 = vsub.f32 %v752, %v753
    %v755 = vand.u32 %v754, 4294901760
    %756 = vmatpush.xpose.msra.mxu0 %v755
    %v757 = vand.u32 %v654, 4294901760
    %v758 = vsub.f32 %v654, %v757
    %v759 = vand.u32 %v758, 4294901760
    %v760 = vsub.f32 %v758, %v759
    %v761 = vand.u32 %v760, 4294901760
    %762 = vmatpush.xpose.msra.mxu0 %v761
    %v763 = vand.u32 %v651, 4294901760
    %v764 = vsub.f32 %v651, %v763
    %v765 = vand.u32 %v764, 4294901760
    %v766 = vsub.f32 %v764, %v765
    %v767 = vand.u32 %v766, 4294901760
    %768 = vmatpush.xpose.msra.mxu0 %v767
    %v769 = vand.u32 %v648, 4294901760
    %v770 = vsub.f32 %v648, %v769
    %v771 = vand.u32 %v770, 4294901760
    %v772 = vsub.f32 %v770, %v771
    %v773 = vand.u32 %v772, 4294901760
    %774 = vmatpush.xpose.msra.mxu0 %v773
    %v775 = vand.u32 %v645, 4294901760
    %v776 = vsub.f32 %v645, %v775
    %v777 = vand.u32 %v776, 4294901760
    %v778 = vsub.f32 %v776, %v777
    %v779 = vand.u32 %v778, 4294901760
    %780 = vmatpush.xpose.msra.mxu0 %v779
    %v781 = vand.u32 %v642, 4294901760
    %v782 = vsub.f32 %v642, %v781
    %v783 = vand.u32 %v782, 4294901760
    %v784 = vsub.f32 %v782, %v783
    %v785 = vand.u32 %v784, 4294901760
    %786 = vmatpush.xpose.msra.mxu0 %v785
    %v787 = vand.u32 %v639, 4294901760
    %v788 = vsub.f32 %v639, %v787
    %v789 = vand.u32 %v788, 4294901760
    %v790 = vsub.f32 %v788, %v789
    %v791 = vand.u32 %v790, 4294901760
    %792 = vmatpush.xpose.msra.mxu0 %v791
    %v793 = vand.u32 %v636, 4294901760
    %v794 = vsub.f32 %v636, %v793
    %v795 = vand.u32 %v794, 4294901760
    %v796 = vsub.f32 %v794, %v795
    %v797 = vand.u32 %v796, 4294901760
    %798 = vmatpush.xpose.msra.mxu0 %v797
    %v799 = vand.u32 %v633, 4294901760
    %v800 = vsub.f32 %v633, %v799
    %v801 = vand.u32 %v800, 4294901760
    %v802 = vsub.f32 %v800, %v801
    %v803 = vand.u32 %v802, 4294901760
    %804 = vmatpush.xpose.msra.mxu0 %v803
    %v805 = vand.u32 %v630, 4294901760
    %v806 = vsub.f32 %v630, %v805
    %v807 = vand.u32 %v806, 4294901760
    %v808 = vsub.f32 %v806, %v807
    %v809 = vand.u32 %v808, 4294901760
    %810 = vmatpush.xpose.msra.mxu0 %v809
    %v811 = vand.u32 %v627, 4294901760
    %v812 = vsub.f32 %v627, %v811
    %v813 = vand.u32 %v812, 4294901760
    %v814 = vsub.f32 %v812, %v813
    %v815 = vand.u32 %v814, 4294901760
    %816 = vmatpush.xpose.msra.mxu0 %v815
    %v817 = vand.u32 %v624, 4294901760
    %v818 = vsub.f32 %v624, %v817
    %v819 = vand.u32 %v818, 4294901760
    %v820 = vsub.f32 %v818, %v819
    %v821 = vand.u32 %v820, 4294901760
    %822 = vmatpush.xpose.msra.mxu0 %v821
    %v823 = vand.u32 %v621, 4294901760
    %v824 = vsub.f32 %v621, %v823
    %v825 = vand.u32 %v824, 4294901760
    %v826 = vsub.f32 %v824, %v825
    %v827 = vand.u32 %v826, 4294901760
    %828 = vmatpush.xpose.msra.mxu0 %v827
    %v829 = vand.u32 %v609, 4294901760
    %830 = vmatmul.f32.gmra.mxu0 %v829
    %v831 = vpop.f32.mrf.mxu0
    %v832 = vadd.f32 %v707, %v831
    %v833 = vand.u32 %v612, 4294901760
    %834 = vmatmul.f32.gmra.mxu0 %v833
    %v835 = vpop.f32.mrf.mxu0
    %v836 = vadd.f32 %v715, %v835
    %v837 = vand.u32 %v615, 4294901760
    %838 = vmatmul.f32.gmra.mxu0 %v837
    %v839 = vpop.f32.mrf.mxu0
    %v840 = vadd.f32 %v723, %v839
    %v841 = vand.u32 %v618, 4294901760
    %842 = vmatmul.f32.gmra.mxu0 %v841
    %v843 = vpop.f32.mrf.mxu0
    %v844 = vadd.f32 %v731, %v843
    %845 = vdwg.mxu0
    %v846 = vand.u32 %v666, 4294901760
    %v847 = vsub.f32 %v666, %v846
    %848 = vmatpush.xpose.msra.mxu0 %v847
    %v849 = vand.u32 %v663, 4294901760
    %v850 = vsub.f32 %v663, %v849
    %851 = vmatpush.xpose.msra.mxu0 %v850
    %v852 = vand.u32 %v660, 4294901760
    %v853 = vsub.f32 %v660, %v852
    %854 = vmatpush.xpose.msra.mxu0 %v853
    %v855 = vand.u32 %v657, 4294901760
    %v856 = vsub.f32 %v657, %v855
    %857 = vmatpush.xpose.msra.mxu0 %v856
    %v858 = vand.u32 %v654, 4294901760
    %v859 = vsub.f32 %v654, %v858
    %860 = vmatpush.xpose.msra.mxu0 %v859
    %v861 = vand.u32 %v651, 4294901760
    %v862 = vsub.f32 %v651, %v861
    %863 = vmatpush.xpose.msra.mxu0 %v862
    %v864 = vand.u32 %v648, 4294901760
    %v865 = vsub.f32 %v648, %v864
    %866 = vmatpush.xpose.msra.mxu0 %v865
    %v867 = vand.u32 %v645, 4294901760
    %v868 = vsub.f32 %v645, %v867
    %869 = vmatpush.xpose.msra.mxu0 %v868
    %v870 = vand.u32 %v642, 4294901760
    %v871 = vsub.f32 %v642, %v870
    %872 = vmatpush.xpose.msra.mxu0 %v871
    %v873 = vand.u32 %v639, 4294901760
    %v874 = vsub.f32 %v639, %v873
    %875 = vmatpush.xpose.msra.mxu0 %v874
    %v876 = vand.u32 %v636, 4294901760
    %v877 = vsub.f32 %v636, %v876
    %878 = vmatpush.xpose.msra.mxu0 %v877
    %v879 = vand.u32 %v633, 4294901760
    %v880 = vsub.f32 %v633, %v879
    %881 = vmatpush.xpose.msra.mxu0 %v880
    %v882 = vand.u32 %v630, 4294901760
    %v883 = vsub.f32 %v630, %v882
    %884 = vmatpush.xpose.msra.mxu0 %v883
    %v885 = vand.u32 %v627, 4294901760
    %v886 = vsub.f32 %v627, %v885
    %887 = vmatpush.xpose.msra.mxu0 %v886
    %v888 = vand.u32 %v624, 4294901760
    %v889 = vsub.f32 %v624, %v888
    %890 = vmatpush.xpose.msra.mxu0 %v889
    %v891 = vand.u32 %v621, 4294901760
    %v892 = vsub.f32 %v621, %v891
    %893 = vmatpush.xpose.msra.mxu0 %v892
    %v894 = vand.u32 %v609, 4294901760
    %v895 = vsub.f32 %v609, %v894
    %896 = vmatmul.f32.gmra.mxu0 %v895
    %v897 = vpop.f32.mrf.mxu0
    %v898 = vadd.f32 %v832, %v897
    %v899 = vand.u32 %v612, 4294901760
    %v900 = vsub.f32 %v612, %v899
    %901 = vmatmul.f32.gmra.mxu0 %v900
    %v902 = vpop.f32.mrf.mxu0
    %v903 = vadd.f32 %v836, %v902
    %v904 = vand.u32 %v615, 4294901760
    %v905 = vsub.f32 %v615, %v904
    %906 = vmatmul.f32.gmra.mxu0 %v905
    %v907 = vpop.f32.mrf.mxu0
    %v908 = vadd.f32 %v840, %v907
    %v909 = vand.u32 %v618, 4294901760
    %v910 = vsub.f32 %v618, %v909
    %911 = vmatmul.f32.gmra.mxu0 %v910
    %v912 = vpop.f32.mrf.mxu0
    %v913 = vadd.f32 %v844, %v912
    %914 = vdwg.mxu0
    %v915 = vand.u32 %v666, 4294901760
    %916 = vmatpush.xpose.msra.mxu0 %v915
    %v917 = vand.u32 %v663, 4294901760
    %918 = vmatpush.xpose.msra.mxu0 %v917
    %v919 = vand.u32 %v660, 4294901760
    %920 = vmatpush.xpose.msra.mxu0 %v919
    %v921 = vand.u32 %v657, 4294901760
    %922 = vmatpush.xpose.msra.mxu0 %v921
    %v923 = vand.u32 %v654, 4294901760
    %924 = vmatpush.xpose.msra.mxu0 %v923
    %v925 = vand.u32 %v651, 4294901760
    %926 = vmatpush.xpose.msra.mxu0 %v925
    %v927 = vand.u32 %v648, 4294901760
    %928 = vmatpush.xpose.msra.mxu0 %v927
    %v929 = vand.u32 %v645, 4294901760
    %930 = vmatpush.xpose.msra.mxu0 %v929
    %v931 = vand.u32 %v642, 4294901760
    %932 = vmatpush.xpose.msra.mxu0 %v931
    %v933 = vand.u32 %v639, 4294901760
    %934 = vmatpush.xpose.msra.mxu0 %v933
    %v935 = vand.u32 %v636, 4294901760
    %936 = vmatpush.xpose.msra.mxu0 %v935
    %v937 = vand.u32 %v633, 4294901760
    %938 = vmatpush.xpose.msra.mxu0 %v937
    %v939 = vand.u32 %v630, 4294901760
    %940 = vmatpush.xpose.msra.mxu0 %v939
    %v941 = vand.u32 %v627, 4294901760
    %942 = vmatpush.xpose.msra.mxu0 %v941
    %v943 = vand.u32 %v624, 4294901760
    %944 = vmatpush.xpose.msra.mxu0 %v943
    %v945 = vand.u32 %v621, 4294901760
    %946 = vmatpush.xpose.msra.mxu0 %v945
    %v947 = vand.u32 %v609, 4294901760
    %v948 = vsub.f32 %v609, %v947
    %v949 = vand.u32 %v948, 4294901760
    %950 = vmatmul.f32.gmra.mxu0 %v949
    %v951 = vpop.f32.mrf.mxu0
    %v952 = vadd.f32 %v898, %v951
    %v953 = vand.u32 %v612, 4294901760
    %v954 = vsub.f32 %v612, %v953
    %v955 = vand.u32 %v954, 4294901760
    %956 = vmatmul.f32.gmra.mxu0 %v955
    %v957 = vpop.f32.mrf.mxu0
    %v958 = vadd.f32 %v903, %v957
    %v959 = vand.u32 %v615, 4294901760
    %v960 = vsub.f32 %v615, %v959
    %v961 = vand.u32 %v960, 4294901760
    %962 = vmatmul.f32.gmra.mxu0 %v961
    %v963 = vpop.f32.mrf.mxu0
    %v964 = vadd.f32 %v908, %v963
    %v965 = vand.u32 %v618, 4294901760
    %v966 = vsub.f32 %v618, %v965
    %v967 = vand.u32 %v966, 4294901760
    %968 = vmatmul.f32.gmra.mxu0 %v967
    %v969 = vpop.f32.mrf.mxu0
    %v970 = vadd.f32 %v913, %v969
    %971 = vdwg.mxu0
    %v972 = vand.u32 %v666, 4294901760
    %v973 = vsub.f32 %v666, %v972
    %v974 = vand.u32 %v973, 4294901760
    %975 = vmatpush.xpose.msra.mxu0 %v974
    %v976 = vand.u32 %v663, 4294901760
    %v977 = vsub.f32 %v663, %v976
    %v978 = vand.u32 %v977, 4294901760
    %979 = vmatpush.xpose.msra.mxu0 %v978
    %v980 = vand.u32 %v660, 4294901760
    %v981 = vsub.f32 %v660, %v980
    %v982 = vand.u32 %v981, 4294901760
    %983 = vmatpush.xpose.msra.mxu0 %v982
    %v984 = vand.u32 %v657, 4294901760
    %v985 = vsub.f32 %v657, %v984
    %v986 = vand.u32 %v985, 4294901760
    %987 = vmatpush.xpose.msra.mxu0 %v986
    %v988 = vand.u32 %v654, 4294901760
    %v989 = vsub.f32 %v654, %v988
    %v990 = vand.u32 %v989, 4294901760
    %991 = vmatpush.xpose.msra.mxu0 %v990
    %v992 = vand.u32 %v651, 4294901760
    %v993 = vsub.f32 %v651, %v992
    %v994 = vand.u32 %v993, 4294901760
    %995 = vmatpush.xpose.msra.mxu0 %v994
    %v996 = vand.u32 %v648, 4294901760
    %v997 = vsub.f32 %v648, %v996
    %v998 = vand.u32 %v997, 4294901760
    %999 = vmatpush.xpose.msra.mxu0 %v998
    %v1000 = vand.u32 %v645, 4294901760
    %v1001 = vsub.f32 %v645, %v1000
    %v1002 = vand.u32 %v1001, 4294901760
    %1003 = vmatpush.xpose.msra.mxu0 %v1002
    %v1004 = vand.u32 %v642, 4294901760
    %v1005 = vsub.f32 %v642, %v1004
    %v1006 = vand.u32 %v1005, 4294901760
    %1007 = vmatpush.xpose.msra.mxu0 %v1006
    %v1008 = vand.u32 %v639, 4294901760
    %v1009 = vsub.f32 %v639, %v1008
    %v1010 = vand.u32 %v1009, 4294901760
    %1011 = vmatpush.xpose.msra.mxu0 %v1010
    %v1012 = vand.u32 %v636, 4294901760
    %v1013 = vsub.f32 %v636, %v1012
    %v1014 = vand.u32 %v1013, 4294901760
    %1015 = vmatpush.xpose.msra.mxu0 %v1014
    %v1016 = vand.u32 %v633, 4294901760
    %v1017 = vsub.f32 %v633, %v1016
    %v1018 = vand.u32 %v1017, 4294901760
    %1019 = vmatpush.xpose.msra.mxu0 %v1018
    %v1020 = vand.u32 %v630, 4294901760
    %v1021 = vsub.f32 %v630, %v1020
    %v1022 = vand.u32 %v1021, 4294901760
    %1023 = vmatpush.xpose.msra.mxu0 %v1022
    %v1024 = vand.u32 %v627, 4294901760
    %v1025 = vsub.f32 %v627, %v1024
    %v1026 = vand.u32 %v1025, 4294901760
    %1027 = vmatpush.xpose.msra.mxu0 %v1026
    %v1028 = vand.u32 %v624, 4294901760
    %v1029 = vsub.f32 %v624, %v1028
    %v1030 = vand.u32 %v1029, 4294901760
    %1031 = vmatpush.xpose.msra.mxu0 %v1030
    %v1032 = vand.u32 %v621, 4294901760
    %v1033 = vsub.f32 %v621, %v1032
    %v1034 = vand.u32 %v1033, 4294901760
    %1035 = vmatpush.xpose.msra.mxu0 %v1034
    %v1036 = vand.u32 %v609, 4294901760
    %1037 = vmatmul.f32.gmra.mxu0 %v1036
    %v1038 = vpop.f32.mrf.mxu0
    %v1039 = vadd.f32 %v952, %v1038
    %v1040 = vand.u32 %v612, 4294901760
    %1041 = vmatmul.f32.gmra.mxu0 %v1040
    %v1042 = vpop.f32.mrf.mxu0
    %v1043 = vadd.f32 %v958, %v1042
    %v1044 = vand.u32 %v615, 4294901760
    %1045 = vmatmul.f32.gmra.mxu0 %v1044
    %v1046 = vpop.f32.mrf.mxu0
    %v1047 = vadd.f32 %v964, %v1046
    %v1048 = vand.u32 %v618, 4294901760
    %1049 = vmatmul.f32.gmra.mxu0 %v1048
    %v1050 = vpop.f32.mrf.mxu0
    %v1051 = vadd.f32 %v970, %v1050
    %1052 = vdwg.mxu0
    %v1053 = vand.u32 %v666, 4294901760
    %1054 = vmatpush.xpose.msra.mxu0 %v1053
    %v1055 = vand.u32 %v663, 4294901760
    %1056 = vmatpush.xpose.msra.mxu0 %v1055
    %v1057 = vand.u32 %v660, 4294901760
    %1058 = vmatpush.xpose.msra.mxu0 %v1057
    %v1059 = vand.u32 %v657, 4294901760
    %1060 = vmatpush.xpose.msra.mxu0 %v1059
    %v1061 = vand.u32 %v654, 4294901760
    %1062 = vmatpush.xpose.msra.mxu0 %v1061
    %v1063 = vand.u32 %v651, 4294901760
    %1064 = vmatpush.xpose.msra.mxu0 %v1063
    %v1065 = vand.u32 %v648, 4294901760
    %1066 = vmatpush.xpose.msra.mxu0 %v1065
    %v1067 = vand.u32 %v645, 4294901760
    %1068 = vmatpush.xpose.msra.mxu0 %v1067
    %v1069 = vand.u32 %v642, 4294901760
    %1070 = vmatpush.xpose.msra.mxu0 %v1069
    %v1071 = vand.u32 %v639, 4294901760
    %1072 = vmatpush.xpose.msra.mxu0 %v1071
    %v1073 = vand.u32 %v636, 4294901760
    %1074 = vmatpush.xpose.msra.mxu0 %v1073
    %v1075 = vand.u32 %v633, 4294901760
    %1076 = vmatpush.xpose.msra.mxu0 %v1075
    %v1077 = vand.u32 %v630, 4294901760
    %1078 = vmatpush.xpose.msra.mxu0 %v1077
    %v1079 = vand.u32 %v627, 4294901760
    %1080 = vmatpush.xpose.msra.mxu0 %v1079
    %v1081 = vand.u32 %v624, 4294901760
    %1082 = vmatpush.xpose.msra.mxu0 %v1081
    %v1083 = vand.u32 %v621, 4294901760
    %1084 = vmatpush.xpose.msra.mxu0 %v1083
    %v1085 = vand.u32 %v609, 4294901760
    %1086 = vmatmul.f32.gmra.mxu0 %v1085
    %v1087 = vpop.f32.mrf.mxu0
    %v1088 = vadd.f32 %v1039, %v1087
    %v1089 = vand.u32 %v612, 4294901760
    %1090 = vmatmul.f32.gmra.mxu0 %v1089
    %v1091 = vpop.f32.mrf.mxu0
    %v1092 = vadd.f32 %v1043, %v1091
    %v1093 = vand.u32 %v615, 4294901760
    %1094 = vmatmul.f32.gmra.mxu0 %v1093
    %v1095 = vpop.f32.mrf.mxu0
    %v1096 = vadd.f32 %v1047, %v1095
    %v1097 = vand.u32 %v618, 4294901760
    %1098 = vmatmul.f32.gmra.mxu0 %v1097
    %v1099 = vpop.f32.mrf.mxu0
    %v1100 = vadd.f32 %v1051, %v1099
    %1101 = vdwg.mxu0
    %v1102 = vmul.f32 %v1088, %v563
    %v1103 = vmul.f32 %v1092, %v567
    %v1104 = vmul.f32 %v1096, %v571
    %v1105 = vmul.f32 %v1100, %v575
    %v1106 = vadd.f32 %v1102, %v1103
    %v1107 = vadd.f32 %v1106, %v1104
    %v1108 = vadd.f32 %v1107, %v1105
    %v1109 = vrot.slane %v1108, 4
    %v1110 = vadd.f32 %v1108, %v1109
    %v1111 = vrot.slane %v1110, 2
    %v1112 = vadd.f32 %v1110, %v1111
    %v1113 = vrot.slane %v1112, 1
    %v1114 = vadd.f32 %v1112, %v1113
    %1115 = vst [vmem:[#allocation8] sm:$0x1] %v1114
    // Predicated region
    $region26: #{tpu_custom_call.1} parent=1 // pred_check
      _
    $region27: #{tpu_custom_call.1} parent=1 // pred_check_branch
      %1117 = sbr.rel (0) target = $region29
    $region28: #{tpu_custom_call.1} parent=1 // pred_region
      %1119 = vsyncadd [#allocation4], 0
      %s1121 = sshll.u32 [#allocation8], 4
      %s1122 = int_to_ptr.vmem [resolvable:$true] %s1121
      %s1123 = sshll.u32 %s3, 4
      %s1124 = int_to_ptr.hbm [resolvable:$true] %s1123
      %1126 = dma.vmem_to_hbm [thread:$0]  %s1122, 16, %s1124, [#allocation4]
    $region29: #{tpu_custom_call.1} parent=1 // pred_fallthru
      _
    // Predicated region
    $region30: #{tpu_custom_call.1} parent=1 // pred_check
      _
    $region31: #{tpu_custom_call.1} parent=1 // pred_check_branch
      %1128 = sbr.rel (0) target = $region33
    $region32: #{tpu_custom_call.1} parent=1 // pred_region
      %1130 = dma.done [#allocation4], 16
    $region33: #{tpu_custom_call.1} parent=1 // pred_fallthru
      _
    %1131 = vsyncpa [#allocation3], 1
    %1132 = vsyncpa [#allocation6], 1
    %1133 = vsyncpa [#allocation4], 1

</llo_original>
